<compile_context>
chip_gen: v5e
topology: v5e:2x2
jax: 0.10.0
libtpu: 0.0.40
codegen_flags: <defaults>
</compile_context>

<pallas_src>
import jax
import jax.numpy as jnp
from jax.experimental import pallas as pl
from jax.experimental.pallas import tpu as pltpu


def actor_mlp_kernel(obs_ref, goal_ref,
                     w1o_ref, w1g_ref, b1_ref,
                     w2_ref, b2_ref,
                     w3_ref, b3_ref,
                     w4_ref, b4_ref,
                     o_ref):
    """Feature-major fused MLP: activations are (features, tb), batch on lanes."""
    cdtype = w2_ref.dtype   # MXU operand dtype (f32 or bf16); accumulation is f32

    # Layer 1: fused concat as split-K matmul: W1[:od]^T @ obs + W1[od:]^T @ goal
    h = jnp.dot(w1o_ref[...], obs_ref[...], preferred_element_type=jnp.float32)
    h = h + jnp.dot(w1g_ref[...], goal_ref[...], preferred_element_type=jnp.float32)
    h = jnp.maximum(h + b1_ref[...], 0.0)

    # Layer 2: Linear + ReLU
    h = jnp.dot(w2_ref[...], h.astype(cdtype), preferred_element_type=jnp.float32)
    h = jnp.maximum(h + b2_ref[...], 0.0)

    # Layer 3: Linear + ReLU
    h = jnp.dot(w3_ref[...], h.astype(cdtype), preferred_element_type=jnp.float32)
    h = jnp.maximum(h + b3_ref[...], 0.0)

    # Layer 4: Linear + Tanh
    h = jnp.dot(w4_ref[...], h.astype(cdtype), preferred_element_type=jnp.float32)
    o_ref[...] = jnp.tanh(h + b4_ref[...]).astype(o_ref.dtype)


def _round_up(x, m):
    return ((x + m - 1) // m) * m


def actor_forward(obs, goal, params, *, block_batch=4096,
                  compute_dtype=jnp.float32):
    """Pallas implementation of Actor.forward(obs, goal).

    obs: (B, obs_dim), goal: (B, goal_dim) -> action (B, action_dim), like the
    PyTorch module.  Internally everything is feature-major with the batch on
    the lane axis.
    """
    (w1, b1), (w2, b2), (w3, b3), (w4, b4) = params
    batch, obs_dim = obs.shape
    goal_dim = goal.shape[1]
    hidden_dim = w1.shape[1]
    action_dim = w4.shape[1]

    # One-time layout plumbing.  Weight-sized transposes/casts are free; the
    # activation transposes are batch-sized but buy fully dense lanes and
    # unmasked stores inside the kernel.
    obs_t = obs.T.astype(compute_dtype)            # (obs_dim, B)
    goal_t = goal.T.astype(compute_dtype)          # (goal_dim, B)

    w1o_t = w1[:obs_dim].T.astype(compute_dtype)   # (hidden, obs_dim)
    w1g_t = w1[obs_dim:].T.astype(compute_dtype)   # (hidden, goal_dim)
    w2_t = w2.T.astype(compute_dtype)              # (hidden, hidden)
    w3_t = w3.T.astype(compute_dtype)              # (hidden, hidden)
    w4_t = w4.T.astype(compute_dtype)              # (action, hidden)
    # Biases stay f32: added to the f32 MXU accumulator, broadcast over lanes.
    b1_t = b1.reshape(hidden_dim, 1).astype(jnp.float32)
    b2_t = b2.reshape(hidden_dim, 1).astype(jnp.float32)
    b3_t = b3.reshape(hidden_dim, 1).astype(jnp.float32)
    b4_t = b4.reshape(action_dim, 1).astype(jnp.float32)

    # Batch tile on the LANE axis.
    if batch >= 256:
        # Multiple of 128 lanes (dense DMA, unmasked vst) and >= 2 grid steps so
        # the "parallel" axis can shard across v7x's two TensorCores.
        tb = min(block_batch, _round_up(pl.cdiv(batch, 2), 128))
    else:
        tb = batch   # single block covering the full (tiny) batch
    grid = (pl.cdiv(batch, tb),)

    # Lane-tiled activations (double-buffered by the pipeliner).
    lane_tile = lambda rows: pl.BlockSpec((rows, tb), lambda i: (0, i))
    # Grid-invariant, VMEM-resident weights/biases (never re-fetched per step).
    resident = pl.BlockSpec(memory_space=pltpu.MemorySpace.VMEM)

    out_t = pl.pallas_call(
        actor_mlp_kernel,
        out_shape=jax.ShapeDtypeStruct((action_dim, batch), jnp.float32),
        grid=grid,
        in_specs=[
            lane_tile(obs_dim), lane_tile(goal_dim),
            resident, resident, resident,   # w1_obs^T, w1_goal^T, b1
            resident, resident,             # w2^T, b2
            resident, resident,             # w3^T, b3
            resident, resident,             # w4^T, b4
        ],
        out_specs=lane_tile(action_dim),
        compiler_params=pltpu.CompilerParams(
            dimension_semantics=("parallel",)),
    )(obs_t, goal_t, w1o_t, w1g_t, b1_t, w2_t, b2_t, w3_t, b3_t, w4_t, b4_t)

    return out_t.T   # (B, action_dim), matching the PyTorch module's output


def init_actor_params(key, input_dim, action_dim, hidden_dim):
    """Deterministic synthetic init (weights [in, out], biases [1, out]).
    # TODO(synk): original module applies an external `weight_init`; replaced with
    # a deterministic uniform init (forward-pass semantics are unchanged).
    """
    dims = [(input_dim, hidden_dim),
            (hidden_dim, hidden_dim),
            (hidden_dim, hidden_dim),
            (hidden_dim, action_dim)]
    params = []
    for (din, dout) in dims:
        key, kw, kb = jax.random.split(key, 3)
        scale = 1.0 / jnp.sqrt(jnp.float32(din))
        w = jax.random.uniform(kw, (din, dout), jnp.float32, -scale, scale)
        b = jax.random.uniform(kb, (1, dout), jnp.float32, -scale, scale)
        params.append((w, b))
    return params


def actor_reference(obs, goal, params):
    """Pure-JAX reference for the correctness check."""
    x = jnp.concatenate([obs, goal], axis=1)
    (w1, b1), (w2, b2), (w3, b3), (w4, b4) = params
    h = jnp.maximum(x @ w1 + b1, 0.0)
    h = jnp.maximum(h @ w2 + b2, 0.0)
    h = jnp.maximum(h @ w3 + b3, 0.0)
    return jnp.tanh(h @ w4 + b4)


if __name__ == "__main__":
    key = jax.random.PRNGKey(0)

    obs_dim = 12
    goal_dim = 4
    input_dim = obs_dim + goal_dim   # 16
    hidden_dim = 32
    action_dim = 8

    k_obs, k_goal, k_params = jax.random.split(key, 3)
    params = init_actor_params(k_params, input_dim, action_dim, hidden_dim)

    # Small deployment-like shape (grid = (1,), tb = 8).  At this size the call
    # is pure launch/DMA latency; batch many env states for real throughput.
    batch = 8
    obs = jax.random.normal(k_obs, (batch, obs_dim), jnp.float32)
    goal = jax.random.normal(k_goal, (batch, goal_dim), jnp.float32)
    action = jax.block_until_ready(actor_forward(obs, goal, params))
    ref = actor_reference(obs, goal, params)
    assert action.shape == (batch, action_dim)
    assert jnp.allclose(action, ref, atol=1e-5, rtol=1e-5)

    # Larger batch: exercises the lane-tiled grid (tb = 512, grid = (2,)),
    # dense 128-lane tiles, and the 2-step parallel axis for v7x's two TCs.
    big_batch = 1024
    k_obs2, k_goal2 = jax.random.split(k_obs)
    obs_b = jax.random.normal(k_obs2, (big_batch, obs_dim), jnp.float32)
    goal_b = jax.random.normal(k_goal2, (big_batch, goal_dim), jnp.float32)
    action_b = jax.block_until_ready(actor_forward(obs_b, goal_b, params))
    ref_b = actor_reference(obs_b, goal_b, params)
    assert action_b.shape == (big_batch, action_dim)
    assert jnp.allclose(action_b, ref_b, atol=1e-5, rtol=1e-5)

    # bf16 matmul-operand path (recommended on v6e/v7x; elementwise stays f32 so
    # it also runs on v5e).  Compared against the f32 reference at a tolerance
    # consistent with bf16 input rounding.
    action_bf = jax.block_until_ready(
        actor_forward(obs_b, goal_b, params, compute_dtype=jnp.bfloat16))
    assert action_bf.shape == (big_batch, action_dim)
    assert jnp.allclose(action_bf, ref_b, atol=5e-2, rtol=5e-2)

    print("KERNEL_OK")
</pallas_src>

<mosaic_0001>
module attributes {stable_mosaic.version = 11 : i64} {
  func.func @actor_mlp_kernel(%arg0: i32, %arg1: memref<12x8xf32, #tpu.memory_space<vmem>>, %arg2: memref<4x8xf32, #tpu.memory_space<vmem>>, %arg3: memref<32x12xf32, #tpu.memory_space<vmem>>, %arg4: memref<32x4xf32, #tpu.memory_space<vmem>>, %arg5: memref<32x1xf32, #tpu.memory_space<vmem>>, %arg6: memref<32x32xf32, #tpu.memory_space<vmem>>, %arg7: memref<32x1xf32, #tpu.memory_space<vmem>>, %arg8: memref<32x32xf32, #tpu.memory_space<vmem>>, %arg9: memref<32x1xf32, #tpu.memory_space<vmem>>, %arg10: memref<8x32xf32, #tpu.memory_space<vmem>>, %arg11: memref<8x1xf32, #tpu.memory_space<vmem>>, %arg12: memref<8x8xf32, #tpu.memory_space<vmem>>) attributes {dimension_semantics = [#tpu.dimension_semantics<parallel>], iteration_bounds = array<i64: 1>, scalar_prefetch = 0 : i64, scratch_operands = 0 : i64, tpu.core_type = #tpu.core_type<tc>, window_params = [{transform_indices = @transform_0, window_bounds = array<i64: 12, 8>}, {transform_indices = @transform_1, window_bounds = array<i64: 4, 8>}, {pipeline_mode = #tpu.pipeline_mode<synchronous>, transform_indices = @transform_2, window_bounds = array<i64: 32, 12>}, {pipeline_mode = #tpu.pipeline_mode<synchronous>, transform_indices = @transform_3, window_bounds = array<i64: 32, 4>}, {pipeline_mode = #tpu.pipeline_mode<synchronous>, transform_indices = @transform_4, window_bounds = array<i64: 32, 1>}, {pipeline_mode = #tpu.pipeline_mode<synchronous>, transform_indices = @transform_5, window_bounds = array<i64: 32, 32>}, {pipeline_mode = #tpu.pipeline_mode<synchronous>, transform_indices = @transform_6, window_bounds = array<i64: 32, 1>}, {pipeline_mode = #tpu.pipeline_mode<synchronous>, transform_indices = @transform_7, window_bounds = array<i64: 32, 32>}, {pipeline_mode = #tpu.pipeline_mode<synchronous>, transform_indices = @transform_8, window_bounds = array<i64: 32, 1>}, {pipeline_mode = #tpu.pipeline_mode<synchronous>, transform_indices = @transform_9, window_bounds = array<i64: 8, 32>}, {pipeline_mode = #tpu.pipeline_mode<synchronous>, transform_indices = @transform_10, window_bounds = array<i64: 8, 1>}, {transform_indices = @transform_11, window_bounds = array<i64: 8, 8>}]} {
    %c0 = arith.constant 0 : index
    %c0_0 = arith.constant 0 : index
    %0 = vector.load %arg3[%c0, %c0_0] : memref<32x12xf32, #tpu.memory_space<vmem>>, vector<32x12xf32>
    %c0_1 = arith.constant 0 : index
    %c0_2 = arith.constant 0 : index
    %1 = vector.load %arg1[%c0_1, %c0_2] : memref<12x8xf32, #tpu.memory_space<vmem>>, vector<12x8xf32>
    %cst = arith.constant dense<0.000000e+00> : vector<32x8xf32>
    %2 = tpu.matmul %0, %1, %cst {dimension_numbers = #tpu.dot_dimension_numbers<[1], [0], [0], [1], [0, 0, 1, 1], [], []>} : vector<32x12xf32>, vector<12x8xf32>, vector<32x8xf32> -> vector<32x8xf32>
    %c0_3 = arith.constant 0 : index
    %c0_4 = arith.constant 0 : index
    %3 = vector.load %arg4[%c0_3, %c0_4] : memref<32x4xf32, #tpu.memory_space<vmem>>, vector<32x4xf32>
    %c0_5 = arith.constant 0 : index
    %c0_6 = arith.constant 0 : index
    %4 = vector.load %arg2[%c0_5, %c0_6] : memref<4x8xf32, #tpu.memory_space<vmem>>, vector<4x8xf32>
    %cst_7 = arith.constant dense<0.000000e+00> : vector<32x8xf32>
    %5 = tpu.matmul %3, %4, %cst_7 {dimension_numbers = #tpu.dot_dimension_numbers<[1], [0], [0], [1], [0, 0, 1, 1], [], []>} : vector<32x4xf32>, vector<4x8xf32>, vector<32x8xf32> -> vector<32x8xf32>
    %6 = arith.addf %2, %5 : vector<32x8xf32>
    %c0_8 = arith.constant 0 : index
    %c0_9 = arith.constant 0 : index
    %7 = vector.load %arg5[%c0_8, %c0_9] : memref<32x1xf32, #tpu.memory_space<vmem>>, vector<32x1xf32>
    %8 = vector.broadcast %7 : vector<32x1xf32> to vector<32x8xf32>
    %9 = arith.addf %6, %8 : vector<32x8xf32>
    %cst_10 = arith.constant 0.000000e+00 : f32
    %10 = vector.broadcast %cst_10 : f32 to vector<32x8xf32>
    %11 = arith.maximumf %9, %10 : vector<32x8xf32>
    %c0_11 = arith.constant 0 : index
    %c0_12 = arith.constant 0 : index
    %12 = vector.load %arg6[%c0_11, %c0_12] : memref<32x32xf32, #tpu.memory_space<vmem>>, vector<32x32xf32>
    %cst_13 = arith.constant dense<0.000000e+00> : vector<32x8xf32>
    %13 = tpu.matmul %12, %11, %cst_13 {dimension_numbers = #tpu.dot_dimension_numbers<[1], [0], [0], [1], [0, 0, 1, 1], [], []>} : vector<32x32xf32>, vector<32x8xf32>, vector<32x8xf32> -> vector<32x8xf32>
    %c0_14 = arith.constant 0 : index
    %c0_15 = arith.constant 0 : index
    %14 = vector.load %arg7[%c0_14, %c0_15] : memref<32x1xf32, #tpu.memory_space<vmem>>, vector<32x1xf32>
    %15 = vector.broadcast %14 : vector<32x1xf32> to vector<32x8xf32>
    %16 = arith.addf %13, %15 : vector<32x8xf32>
    %cst_16 = arith.constant 0.000000e+00 : f32
    %17 = vector.broadcast %cst_16 : f32 to vector<32x8xf32>
    %18 = arith.maximumf %16, %17 : vector<32x8xf32>
    %c0_17 = arith.constant 0 : index
    %c0_18 = arith.constant 0 : index
    %19 = vector.load %arg8[%c0_17, %c0_18] : memref<32x32xf32, #tpu.memory_space<vmem>>, vector<32x32xf32>
    %cst_19 = arith.constant dense<0.000000e+00> : vector<32x8xf32>
    %20 = tpu.matmul %19, %18, %cst_19 {dimension_numbers = #tpu.dot_dimension_numbers<[1], [0], [0], [1], [0, 0, 1, 1], [], []>} : vector<32x32xf32>, vector<32x8xf32>, vector<32x8xf32> -> vector<32x8xf32>
    %c0_20 = arith.constant 0 : index
    %c0_21 = arith.constant 0 : index
    %21 = vector.load %arg9[%c0_20, %c0_21] : memref<32x1xf32, #tpu.memory_space<vmem>>, vector<32x1xf32>
    %22 = vector.broadcast %21 : vector<32x1xf32> to vector<32x8xf32>
    %23 = arith.addf %20, %22 : vector<32x8xf32>
    %cst_22 = arith.constant 0.000000e+00 : f32
    %24 = vector.broadcast %cst_22 : f32 to vector<32x8xf32>
    %25 = arith.maximumf %23, %24 : vector<32x8xf32>
    %c0_23 = arith.constant 0 : index
    %c0_24 = arith.constant 0 : index
    %26 = vector.load %arg10[%c0_23, %c0_24] : memref<8x32xf32, #tpu.memory_space<vmem>>, vector<8x32xf32>
    %cst_25 = arith.constant dense<0.000000e+00> : vector<8x8xf32>
    %27 = tpu.matmul %26, %25, %cst_25 {dimension_numbers = #tpu.dot_dimension_numbers<[1], [0], [0], [1], [0, 0, 1, 1], [], []>} : vector<8x32xf32>, vector<32x8xf32>, vector<8x8xf32> -> vector<8x8xf32>
    %c0_26 = arith.constant 0 : index
    %c0_27 = arith.constant 0 : index
    %28 = vector.load %arg11[%c0_26, %c0_27] : memref<8x1xf32, #tpu.memory_space<vmem>>, vector<8x1xf32>
    %29 = vector.broadcast %28 : vector<8x1xf32> to vector<8x8xf32>
    %30 = arith.addf %27, %29 : vector<8x8xf32>
    %31 = math.tanh %30 : vector<8x8xf32>
    %c0_28 = arith.constant 0 : index
    %c0_29 = arith.constant 0 : index
    %32 = vector.load %arg12[%c0_28, %c0_29] : memref<8x8xf32, #tpu.memory_space<vmem>>, vector<8x8xf32>
    tpu.vector_store %arg12[%c0_28, %c0_29], %31 {strides = array<i32>} : memref<8x8xf32, #tpu.memory_space<vmem>>, vector<8x8xf32>,
    return
  }
  func.func @transform_0(%arg0: i32) -> (i32, i32) {
    %c0_i32 = arith.constant 0 : i32
    %c0_i32_0 = arith.constant 0 : i32
    return %c0_i32, %arg0 : i32, i32
  }
  func.func @transform_1(%arg0: i32) -> (i32, i32) {
    %c0_i32 = arith.constant 0 : i32
    %c0_i32_0 = arith.constant 0 : i32
    return %c0_i32, %arg0 : i32, i32
  }
  func.func @transform_2(%arg0: i32) -> (i32, i32) {
    %c0_i32 = arith.constant 0 : i32
    %c0_i32_0 = arith.constant 0 : i32
    %c0_i32_1 = arith.constant 0 : i32
    return %c0_i32, %c0_i32_0 : i32, i32
  }
  func.func @transform_3(%arg0: i32) -> (i32, i32) {
    %c0_i32 = arith.constant 0 : i32
    %c0_i32_0 = arith.constant 0 : i32
    %c0_i32_1 = arith.constant 0 : i32
    return %c0_i32, %c0_i32_0 : i32, i32
  }
  func.func @transform_4(%arg0: i32) -> (i32, i32) {
    %c0_i32 = arith.constant 0 : i32
    %c0_i32_0 = arith.constant 0 : i32
    %c0_i32_1 = arith.constant 0 : i32
    return %c0_i32, %c0_i32_0 : i32, i32
  }
  func.func @transform_5(%arg0: i32) -> (i32, i32) {
    %c0_i32 = arith.constant 0 : i32
    %c0_i32_0 = arith.constant 0 : i32
    %c0_i32_1 = arith.constant 0 : i32
    return %c0_i32, %c0_i32_0 : i32, i32
  }
  func.func @transform_6(%arg0: i32) -> (i32, i32) {
    %c0_i32 = arith.constant 0 : i32
    %c0_i32_0 = arith.constant 0 : i32
    %c0_i32_1 = arith.constant 0 : i32
    return %c0_i32, %c0_i32_0 : i32, i32
  }
  func.func @transform_7(%arg0: i32) -> (i32, i32) {
    %c0_i32 = arith.constant 0 : i32
    %c0_i32_0 = arith.constant 0 : i32
    %c0_i32_1 = arith.constant 0 : i32
    return %c0_i32, %c0_i32_0 : i32, i32
  }
  func.func @transform_8(%arg0: i32) -> (i32, i32) {
    %c0_i32 = arith.constant 0 : i32
    %c0_i32_0 = arith.constant 0 : i32
    %c0_i32_1 = arith.constant 0 : i32
    return %c0_i32, %c0_i32_0 : i32, i32
  }
  func.func @transform_9(%arg0: i32) -> (i32, i32) {
    %c0_i32 = arith.constant 0 : i32
    %c0_i32_0 = arith.constant 0 : i32
    %c0_i32_1 = arith.constant 0 : i32
    return %c0_i32, %c0_i32_0 : i32, i32
  }
  func.func @transform_10(%arg0: i32) -> (i32, i32) {
    %c0_i32 = arith.constant 0 : i32
    %c0_i32_0 = arith.constant 0 : i32
    %c0_i32_1 = arith.constant 0 : i32
    return %c0_i32, %c0_i32_0 : i32, i32
  }
  func.func @transform_11(%arg0: i32) -> (i32, i32) {
    %c0_i32 = arith.constant 0 : i32
    %c0_i32_0 = arith.constant 0 : i32
    return %c0_i32, %arg0 : i32, i32
  }
}

</mosaic_0001>

<llo_original>
// kernel: tpu_custom_call.1
$region0: #{tpu_custom_call.1}
  #allocation0 [shape = 'u32[]', space=smem, size = 0x4, offset = 0x4, fixed_abs, tag = 'smem constant byte address 0x4 - core index']
  #allocation1 [shape = 'u32[72,128]{1,0:T(1,128)}', space=vmem, size = 0x9000, scoped, tag = 'internal scratch']
  %s0 = inlined_call_operand.vmem [shape: f32[12,8], index: 0, kind: input, shape index: {}]
  %s1 = inlined_call_operand.vmem [shape: f32[4,8], index: 1, kind: input, shape index: {}]
  %s2 = inlined_call_operand.vmem [shape: f32[32,12], index: 2, kind: input, shape index: {}]
  %s3 = inlined_call_operand.vmem [shape: f32[32,4], index: 3, kind: input, shape index: {}]
  %s4 = inlined_call_operand.vmem [shape: f32[32,1], index: 4, kind: input, shape index: {}]
  %s5 = inlined_call_operand.vmem [shape: f32[32,32], index: 5, kind: input, shape index: {}]
  %s6 = inlined_call_operand.vmem [shape: f32[32,1], index: 6, kind: input, shape index: {}]
  %s7 = inlined_call_operand.vmem [shape: f32[32,32], index: 7, kind: input, shape index: {}]
  %s8 = inlined_call_operand.vmem [shape: f32[32,1], index: 8, kind: input, shape index: {}]
  %s9 = inlined_call_operand.vmem [shape: f32[8,32], index: 9, kind: input, shape index: {}]
  %s10 = inlined_call_operand.vmem [shape: f32[8,1], index: 10, kind: input, shape index: {}]
  %s11 = inlined_call_operand.hbm [shape: f32[8,8], index: 11, kind: output, shape index: {}]
  %s12 = sld [smem:[#allocation0]]
  $region54: #{tpu_custom_call.1} parent=0
    _
  %s14 = ssub.s32 1, %s12
  %s15 = scalar_select 0, %s14, %s12
  $region1: #{tpu_custom_call.1} parent=0
    #allocation2 [shape = 'u8[4096]{0}', space=vmem, size = 0x1000, scoped, tag = 'output window, operand 0, single buffered']
    #allocation3 [shape = 's32[1]{0}', space=sflag, size = 0x4, scoped, tag = 'scoped memory for tpu_custom_call.1']
    %16 = vsyncpa [#allocation3], 0
    // Predicated region
    $region2: #{tpu_custom_call.1} parent=1 // pred_check
      _
    $region3: #{tpu_custom_call.1} parent=1 // pred_check_branch
      %18 = sbr.rel (0) target = $region5
    $region4: #{tpu_custom_call.1} parent=1 // pred_region
      _
    $region5: #{tpu_custom_call.1} parent=1 // pred_fallthru
      _
    // Predicated region
    $region6: #{tpu_custom_call.1} parent=1 // pred_check
      _
    $region7: #{tpu_custom_call.1} parent=1 // pred_check_branch
      %20 = sbr.rel (0) target = $region9
    $region8: #{tpu_custom_call.1} parent=1 // pred_region
      _
    $region9: #{tpu_custom_call.1} parent=1 // pred_fallthru
      _
    // Predicated region
    $region10: #{tpu_custom_call.1} parent=1 // pred_check
      _
    $region11: #{tpu_custom_call.1} parent=1 // pred_check_branch
      %22 = sbr.rel (0) target = $region13
    $region12: #{tpu_custom_call.1} parent=1 // pred_region
      _
    $region13: #{tpu_custom_call.1} parent=1 // pred_fallthru
      _
    // Predicated region
    $region14: #{tpu_custom_call.1} parent=1 // pred_check
      _
    $region15: #{tpu_custom_call.1} parent=1 // pred_check_branch
      %24 = sbr.rel (0) target = $region17
    $region16: #{tpu_custom_call.1} parent=1 // pred_region
      _
    $region17: #{tpu_custom_call.1} parent=1 // pred_fallthru
      _
    // Predicated region
    $region18: #{tpu_custom_call.1} parent=1 // pred_check
      _
    $region19: #{tpu_custom_call.1} parent=1 // pred_check_branch
      %26 = sbr.rel (0) target = $region21
    $region20: #{tpu_custom_call.1} parent=1 // pred_region
      _
    $region21: #{tpu_custom_call.1} parent=1 // pred_fallthru
      _
    // Predicated region
    $region22: #{tpu_custom_call.1} parent=1 // pred_check
      _
    $region23: #{tpu_custom_call.1} parent=1 // pred_check_branch
      %28 = sbr.rel (0) target = $region25
    $region24: #{tpu_custom_call.1} parent=1 // pred_region
      _
    $region25: #{tpu_custom_call.1} parent=1 // pred_fallthru
      _
    // Predicated region
    $region26: #{tpu_custom_call.1} parent=1 // pred_check
      _
    $region27: #{tpu_custom_call.1} parent=1 // pred_check_branch
      %30 = sbr.rel (0) target = $region29
    $region28: #{tpu_custom_call.1} parent=1 // pred_region
      _
    $region29: #{tpu_custom_call.1} parent=1 // pred_fallthru
      _
    // Predicated region
    $region30: #{tpu_custom_call.1} parent=1 // pred_check
      _
    $region31: #{tpu_custom_call.1} parent=1 // pred_check_branch
      %32 = sbr.rel (0) target = $region33
    $region32: #{tpu_custom_call.1} parent=1 // pred_region
      _
    $region33: #{tpu_custom_call.1} parent=1 // pred_fallthru
      _
    // Predicated region
    $region34: #{tpu_custom_call.1} parent=1 // pred_check
      _
    $region35: #{tpu_custom_call.1} parent=1 // pred_check_branch
      %34 = sbr.rel (0) target = $region37
    $region36: #{tpu_custom_call.1} parent=1 // pred_region
      _
    $region37: #{tpu_custom_call.1} parent=1 // pred_fallthru
      _
    // Predicated region
    $region38: #{tpu_custom_call.1} parent=1 // pred_check
      _
    $region39: #{tpu_custom_call.1} parent=1 // pred_check_branch
      %36 = sbr.rel (0) target = $region41
    $region40: #{tpu_custom_call.1} parent=1 // pred_region
      _
    $region41: #{tpu_custom_call.1} parent=1 // pred_fallthru
      _
    // Predicated region
    $region42: #{tpu_custom_call.1} parent=1 // pred_check
      _
    $region43: #{tpu_custom_call.1} parent=1 // pred_check_branch
      %38 = sbr.rel (0) target = $region45
    $region44: #{tpu_custom_call.1} parent=1 // pred_region
      _
    $region45: #{tpu_custom_call.1} parent=1 // pred_fallthru
      _
    %v39 = vld [vmem:[%s2] sm:$0xff]
    %v40 = vld [vmem:[%s2 + $0x8] sm:$0xff]
    %v41 = vld [vmem:[%s2 + $0x10] sm:$0xff]
    %v42 = vld [vmem:[%s2 + $0x18] sm:$0xff]
    %v43 = vld [vmem:[%s0] sm:$0xff]
    %v44 = vld [vmem:[%s0 + $0x8] sm:$0xf]
    %v45 = vld [vmem:[%s3] sm:$0xff]
    %v46 = vld [vmem:[%s3 + $0x8] sm:$0xff]
    %v47 = vld [vmem:[%s3 + $0x10] sm:$0xff]
    %v48 = vld [vmem:[%s3 + $0x18] sm:$0xff]
    %v49 = vld [vmem:[%s1] sm:$0xf]
    %vm50 = vcmask 31744
    %v52 = vsel %vm50, %v45, 0
    %v55 = vsel %vm50, %v46, 0
    %v58 = vsel %vm50, %v47, 0
    %v61 = vsel %vm50, %v48, 0
    %vm63 = vcmask 1043456
    %v65 = vsel %vm63, %v49, 0
    %67 = vmatpush.msra.mxu0 0.0
    %68 = vmatpush.msra.mxu0 0.0
    %69 = vmatpush.msra.mxu0 0.0
    %70 = vmatpush.msra.mxu0 0.0
    %71 = vmatpush.msra.mxu0 0.0
    %72 = vmatpush.msra.mxu0 0.0
    %73 = vmatpush.msra.mxu0 0.0
    %74 = vmatpush.msra.mxu0 0.0
    %75 = vmatpush.msra.mxu0 0.0
    %76 = vmatpush.msra.mxu0 0.0
    %77 = vmatpush.msra.mxu0 0.0
    %78 = vmatpush.msra.mxu0 0.0
    %79 = vmatpush.msra.mxu0 0.0
    %80 = vmatpush.msra.mxu0 0.0
    %81 = vmatpush.msra.mxu0 0.0
    %82 = vmatpush.msra.mxu0 %v65
    %83 = vmatmul.f32.gmra.mxu0 %v52
    %v84 = vpop.f32.mrf.mxu0
    %v85 = vadd.f32 0.0, %v84
    %86 = vmatmul.f32.gmra.mxu0 %v55
    %v87 = vpop.f32.mrf.mxu0
    %v88 = vadd.f32 0.0, %v87
    %89 = vmatmul.f32.gmra.mxu0 %v58
    %v90 = vpop.f32.mrf.mxu0
    %v91 = vadd.f32 0.0, %v90
    %92 = vmatmul.f32.gmra.mxu0 %v61
    %v93 = vpop.f32.mrf.mxu0
    %v94 = vadd.f32 0.0, %v93
    %95 = vdwg.mxu0
    %vm96 = vcmask 97280
    %v98 = vsel %vm96, %v39, 0
    %v101 = vsel %vm96, %v40, 0
    %v104 = vsel %vm96, %v41, 0
    %v107 = vsel %vm96, %v42, 0
    %v110 = vsel %vm63, %v44, 0
    %112 = vmatpush.msra.mxu0 0.0
    %113 = vmatpush.msra.mxu0 0.0
    %114 = vmatpush.msra.mxu0 0.0
    %115 = vmatpush.msra.mxu0 0.0
    %116 = vmatpush.msra.mxu0 0.0
    %117 = vmatpush.msra.mxu0 0.0
    %118 = vmatpush.msra.mxu0 0.0
    %119 = vmatpush.msra.mxu0 0.0
    %120 = vmatpush.msra.mxu0 0.0
    %121 = vmatpush.msra.mxu0 0.0
    %122 = vmatpush.msra.mxu0 0.0
    %123 = vmatpush.msra.mxu0 0.0
    %124 = vmatpush.msra.mxu0 0.0
    %125 = vmatpush.msra.mxu0 0.0
    %126 = vmatpush.msra.mxu0 %v110
    %127 = vmatpush.msra.mxu0 %v43
    %128 = vmatmul.f32.gmra.mxu0 %v98
    %v129 = vpop.f32.mrf.mxu0
    %v130 = vadd.f32 %v85, %v129
    %131 = vmatmul.f32.gmra.mxu0 %v101
    %v132 = vpop.f32.mrf.mxu0
    %v133 = vadd.f32 %v88, %v132
    %134 = vmatmul.f32.gmra.mxu0 %v104
    %v135 = vpop.f32.mrf.mxu0
    %v136 = vadd.f32 %v91, %v135
    %137 = vmatmul.f32.gmra.mxu0 %v107
    %v138 = vpop.f32.mrf.mxu0
    %v139 = vadd.f32 %v94, %v138
    %140 = vdwg.mxu0
    %v141 = vld [vmem:[%s4] sm:$0xff]
    %v142 = vld [vmem:[%s4 + $0x8] sm:$0xff]
    %v143 = vld [vmem:[%s4 + $0x10] sm:$0xff]
    %v144 = vld [vmem:[%s4 + $0x18] sm:$0xff]
    %146 = vset.pattern.permute.xlu0 0
    %147 = vperm.xlu0 %146, %v141
    %v148 = vpop.permute.xlu0 %147
    %151 = vset.pattern.permute.xlu0 0
    %152 = vperm.xlu0 %151, %v142
    %v153 = vpop.permute.xlu0 %152
    %156 = vset.pattern.permute.xlu0 0
    %157 = vperm.xlu0 %156, %v143
    %v158 = vpop.permute.xlu0 %157
    %161 = vset.pattern.permute.xlu0 0
    %162 = vperm.xlu0 %161, %v144
    %v163 = vpop.permute.xlu0 %162
    %v165 = vadd.f32 %v130, %v148
    %v166 = vadd.f32 %v133, %v153
    %v167 = vadd.f32 %v136, %v158
    %v168 = vadd.f32 %v139, %v163
    %v169 = vmax.f32 %v165, 0.0
    %v170 = vmax.f32 %v166, 0.0
    %v171 = vmax.f32 %v167, 0.0
    %v172 = vmax.f32 %v168, 0.0
    %v173 = vld [vmem:[%s5] sm:$0xff]
    %v174 = vld [vmem:[%s5 + $0x8] sm:$0xff]
    %v175 = vld [vmem:[%s5 + $0x10] sm:$0xff]
    %v176 = vld [vmem:[%s5 + $0x18] sm:$0xff]
    %v177 = vld [vmem:[%s6] sm:$0xff]
    %v178 = vld [vmem:[%s6 + $0x8] sm:$0xff]
    %v179 = vld [vmem:[%s6 + $0x10] sm:$0xff]
    %v180 = vld [vmem:[%s6 + $0x18] sm:$0xff]
    %182 = vset.pattern.permute.xlu0 0
    %183 = vperm.xlu0 %182, %v177
    %v184 = vpop.permute.xlu0 %183
    %187 = vset.pattern.permute.xlu0 0
    %188 = vperm.xlu0 %187, %v178
    %v189 = vpop.permute.xlu0 %188
    %192 = vset.pattern.permute.xlu0 0
    %193 = vperm.xlu0 %192, %v179
    %v194 = vpop.permute.xlu0 %193
    %197 = vset.pattern.permute.xlu0 0
    %198 = vperm.xlu0 %197, %v180
    %v199 = vpop.permute.xlu0 %198
    %vm201 = vcmask 261120
    %v203 = vsel %vm201, %v173, 0
    %v206 = vsel %vm201, %v174, 0
    %v209 = vsel %vm201, %v175, 0
    %v212 = vsel %vm201, %v176, 0
    %214 = vmatpush.msra.mxu0 0.0
    %215 = vmatpush.msra.mxu0 0.0
    %216 = vmatpush.msra.mxu0 0.0
    %217 = vmatpush.msra.mxu0 0.0
    %218 = vmatpush.msra.mxu0 0.0
    %219 = vmatpush.msra.mxu0 0.0
    %220 = vmatpush.msra.mxu0 0.0
    %221 = vmatpush.msra.mxu0 0.0
    %222 = vmatpush.msra.mxu0 0.0
    %223 = vmatpush.msra.mxu0 0.0
    %224 = vmatpush.msra.mxu0 0.0
    %225 = vmatpush.msra.mxu0 0.0
    %226 = vmatpush.msra.mxu0 %v172
    %227 = vmatpush.msra.mxu0 %v171
    %228 = vmatpush.msra.mxu0 %v170
    %229 = vmatpush.msra.mxu0 %v169
    %230 = vmatmul.f32.gmra.mxu0 %v203
    %v231 = vpop.f32.mrf.mxu0
    %v232 = vadd.f32 %v184, %v231
    %233 = vmatmul.f32.gmra.mxu0 %v206
    %v234 = vpop.f32.mrf.mxu0
    %v235 = vadd.f32 %v189, %v234
    %236 = vmatmul.f32.gmra.mxu0 %v209
    %v237 = vpop.f32.mrf.mxu0
    %v238 = vadd.f32 %v194, %v237
    %239 = vmatmul.f32.gmra.mxu0 %v212
    %v240 = vpop.f32.mrf.mxu0
    %v241 = vadd.f32 %v199, %v240
    %242 = vdwg.mxu0
    %v243 = vmax.f32 %v232, 0.0
    %v244 = vmax.f32 %v235, 0.0
    %v245 = vmax.f32 %v238, 0.0
    %v246 = vmax.f32 %v241, 0.0
    %v247 = vld [vmem:[%s7] sm:$0xff]
    %v248 = vld [vmem:[%s7 + $0x8] sm:$0xff]
    %v249 = vld [vmem:[%s7 + $0x10] sm:$0xff]
    %v250 = vld [vmem:[%s7 + $0x18] sm:$0xff]
    %v251 = vld [vmem:[%s8] sm:$0xff]
    %v252 = vld [vmem:[%s8 + $0x8] sm:$0xff]
    %v253 = vld [vmem:[%s8 + $0x10] sm:$0xff]
    %v254 = vld [vmem:[%s8 + $0x18] sm:$0xff]
    %256 = vset.pattern.permute.xlu0 0
    %257 = vperm.xlu0 %256, %v251
    %v258 = vpop.permute.xlu0 %257
    %261 = vset.pattern.permute.xlu0 0
    %262 = vperm.xlu0 %261, %v252
    %v263 = vpop.permute.xlu0 %262
    %266 = vset.pattern.permute.xlu0 0
    %267 = vperm.xlu0 %266, %v253
    %v268 = vpop.permute.xlu0 %267
    %271 = vset.pattern.permute.xlu0 0
    %272 = vperm.xlu0 %271, %v254
    %v273 = vpop.permute.xlu0 %272
    %v276 = vsel %vm201, %v247, 0
    %v279 = vsel %vm201, %v248, 0
    %v282 = vsel %vm201, %v249, 0
    %v285 = vsel %vm201, %v250, 0
    %287 = vmatpush.msra.mxu0 0.0
    %288 = vmatpush.msra.mxu0 0.0
    %289 = vmatpush.msra.mxu0 0.0
    %290 = vmatpush.msra.mxu0 0.0
    %291 = vmatpush.msra.mxu0 0.0
    %292 = vmatpush.msra.mxu0 0.0
    %293 = vmatpush.msra.mxu0 0.0
    %294 = vmatpush.msra.mxu0 0.0
    %295 = vmatpush.msra.mxu0 0.0
    %296 = vmatpush.msra.mxu0 0.0
    %297 = vmatpush.msra.mxu0 0.0
    %298 = vmatpush.msra.mxu0 0.0
    %299 = vmatpush.msra.mxu0 %v246
    %300 = vmatpush.msra.mxu0 %v245
    %301 = vmatpush.msra.mxu0 %v244
    %302 = vmatpush.msra.mxu0 %v243
    %303 = vmatmul.f32.gmra.mxu0 %v276
    %v304 = vpop.f32.mrf.mxu0
    %v305 = vadd.f32 %v258, %v304
    %306 = vmatmul.f32.gmra.mxu0 %v279
    %v307 = vpop.f32.mrf.mxu0
    %v308 = vadd.f32 %v263, %v307
    %309 = vmatmul.f32.gmra.mxu0 %v282
    %v310 = vpop.f32.mrf.mxu0
    %v311 = vadd.f32 %v268, %v310
    %312 = vmatmul.f32.gmra.mxu0 %v285
    %v313 = vpop.f32.mrf.mxu0
    %v314 = vadd.f32 %v273, %v313
    %315 = vdwg.mxu0
    %v316 = vmax.f32 %v305, 0.0
    %v317 = vmax.f32 %v308, 0.0
    %v318 = vmax.f32 %v311, 0.0
    %v319 = vmax.f32 %v314, 0.0
    %v320 = vld [vmem:[%s9] sm:$0xff]
    %v321 = vld [vmem:[%s10] sm:$0xff]
    %323 = vset.pattern.permute.xlu0 0
    %324 = vperm.xlu0 %323, %v321
    %v325 = vpop.permute.xlu0 %324
    %v328 = vsel %vm201, %v320, 0
    %330 = vmatpush.msra.mxu0 0.0
    %331 = vmatpush.msra.mxu0 0.0
    %332 = vmatpush.msra.mxu0 0.0
    %333 = vmatpush.msra.mxu0 0.0
    %334 = vmatpush.msra.mxu0 0.0
    %335 = vmatpush.msra.mxu0 0.0
    %336 = vmatpush.msra.mxu0 0.0
    %337 = vmatpush.msra.mxu0 0.0
    %338 = vmatpush.msra.mxu0 0.0
    %339 = vmatpush.msra.mxu0 0.0
    %340 = vmatpush.msra.mxu0 0.0
    %341 = vmatpush.msra.mxu0 0.0
    %342 = vmatpush.msra.mxu0 %v319
    %343 = vmatpush.msra.mxu0 %v318
    %344 = vmatpush.msra.mxu0 %v317
    %345 = vmatpush.msra.mxu0 %v316
    %346 = vmatmul.f32.gmra.mxu0 %v328
    %v347 = vpop.f32.mrf.mxu0
    %v348 = vadd.f32 %v325, %v347
    %349 = vdwg.mxu0
    %v350 = vtanh.pop %v348
    %vm351 = vcmask 64512
    %352 = vst.msk [vmem:[#allocation2] sm:$0xff] %vm351, %v350
    // Predicated region
    $region46: #{tpu_custom_call.1} parent=1 // pred_check
      _
    $region47: #{tpu_custom_call.1} parent=1 // pred_check_branch
      %354 = sbr.rel (0) target = $region49
    $region48: #{tpu_custom_call.1} parent=1 // pred_region
      %356 = vsyncadd [#allocation3], 0
      %s358 = sshll.u32 [#allocation2], 4
      %s359 = int_to_ptr.vmem [resolvable:$true] %s358
      %s360 = sshll.u32 %s11, 4
      %s361 = int_to_ptr.hbm [resolvable:$true] %s360
      %363 = dma.vmem_to_hbm [thread:$0]  %s359, 128, %s361, [#allocation3]
    $region49: #{tpu_custom_call.1} parent=1 // pred_fallthru
      _
    // Predicated region
    $region50: #{tpu_custom_call.1} parent=1 // pred_check
      _
    $region51: #{tpu_custom_call.1} parent=1 // pred_check_branch
      %365 = sbr.rel (0) target = $region53
    $region52: #{tpu_custom_call.1} parent=1 // pred_region
      %367 = dma.done [#allocation3], 128
    $region53: #{tpu_custom_call.1} parent=1 // pred_fallthru
      _
    %368 = vsyncpa [#allocation3], 1

</llo_original>
